<compile_context>
chip_gen: v7x
topology: tpu7x:2x2x1
jax: 0.10.0
libtpu: 0.0.40
codegen_flags: <defaults>
</compile_context>

<pallas_src>
import functools

import jax
import jax.numpy as jnp
from jax.experimental import pallas as pl
from jax.experimental.pallas import tpu as pltpu


_TARGET_BLOCK_BYTES = 4 * 1024 * 1024      # padded bytes per input block
_VMEM_LIMIT_BYTES = 32 * 1024 * 1024       # explicit scoped-VMEM budget
_SPLIT_THRESHOLD_BYTES = 1 * 1024 * 1024   # min data before forcing >=2 steps


def _round_up(x, m):
    return ((x + m - 1) // m) * m


def _divisors(n):
    ds = set()
    i = 1
    while i * i <= n:
        if n % i == 0:
            ds.add(i)
            ds.add(n // i)
        i += 1
    return sorted(ds)


def _largest_divisor_at_most(n, limit):
    limit = max(1, min(n, limit))
    return max(d for d in _divisors(n) if d <= limit)


def _sublane_pack(dtype):
    # Native sublane packing: f32 -> 8, bf16/f16 -> 16, int8/fp8 -> 32.
    return max(8, 32 // jnp.dtype(dtype).itemsize)


def _gap_kernel(x_ref, o_ref, acc_ref, *, inv_hw, hw, hw_block, need_mask):
    # x_ref: (tile_n, tile_c, hw_block) lane-dense block.
    # o_ref: (tile_n, tile_c).  acc_ref: f32 accumulator scratch.
    k = pl.program_id(2)

    @pl.when(k == 0)
    def _init():
        acc_ref[...] = jnp.zeros_like(acc_ref)

    x = x_ref[...]
    if need_mask:
        # Ragged last spatial block: zero out-of-bounds lanes before reducing.
        lane = jax.lax.broadcasted_iota(jnp.int32, x.shape, x.ndim - 1)
        valid = (k * hw_block + lane) < hw
        x = jnp.where(valid, x, jnp.zeros((), dtype=x.dtype))

    # f32-accumulating reduction over the lane axis (no f32 copy of the block).
    acc_ref[...] += jnp.sum(x, axis=-1, dtype=jnp.float32)

    @pl.when(k == pl.num_programs(2) - 1)
    def _finalize():
        o_ref[...] = (acc_ref[...] * inv_hw).astype(o_ref.dtype)


def global_avg_flatten(x, *, target_block_bytes=_TARGET_BLOCK_BYTES):
    """x: (N, C, H, W) -> (N, C); mean over H and W."""
    N, C, H, W = x.shape
    HW = H * W
    # Free, contiguous reshape: put H*W in the lane slot.
    x3 = x.reshape(N, C, HW)

    itemsize = jnp.dtype(x.dtype).itemsize
    pack = _sublane_pack(x.dtype)

    # Channel-tile candidates: divisors of C that are multiples of 128
    # (sublane-aligned input + lane-dense output block) or C itself
    # (full-dim blocks are always layout-legal).  Descending order.
    c_cands = sorted({d for d in _divisors(C) if d % 128 == 0} | {C},
                     reverse=True)
    min_tc = min(c_cands)

    def block_bytes(tn, tc, hwb):
        # Padded on-chip footprint of one (tn, tc, hwb) block.
        return tn * _round_up(tc, pack) * _round_up(hwb, 128) * itemsize

    if block_bytes(1, min_tc, HW) <= target_block_bytes:
        # Whole spatial row fits: single reduction step; tile C and fold N.
        hw_block = HW
        tile_c = next(tc for tc in c_cands
                      if block_bytes(1, tc, HW) <= target_block_bytes)
        tile_n = 1
        if tile_c == C:
            max_n = max(1, target_block_bytes // block_bytes(1, C, HW))
            # Prefer a pack-aligned (or full-N) fold for the output block.
            n_opts = [d for d in _divisors(N)
                      if d <= max_n and (d == N or d % pack == 0)]
            tile_n = max(n_opts) if n_opts else _largest_divisor_at_most(N, max_n)
    else:
        # Large feature map: also tile the H*W (reduction) axis.  Smallest
        # aligned channel tile keeps each contiguous DMA segment as long as
        # possible.
        tile_n = 1
        tile_c = min_tc
        c_padded = _round_up(tile_c, pack)
        max_hw = (target_block_bytes // (c_padded * itemsize)) // 128 * 128
        hw_block = min(max(128, max_hw), _round_up(HW, 128))
        if HW % 128 == 0 and hw_block < HW:
            # Prefer an evenly-dividing spatial block (no masked ragged tail)
            # when it does not shrink the block by more than 2x.
            even = _largest_divisor_at_most(HW // 128, hw_block // 128) * 128
            if even >= hw_block // 2:
                hw_block = even

    num_k = pl.cdiv(HW, hw_block)
    need_mask = (HW % hw_block) != 0

    # v7x megacore: make sure there are >=2 "parallel" grid steps when there
    # is enough data for the second TensorCore's bandwidth to matter.
    if ((N // tile_n) * (C // tile_c) == 1
            and N * C * HW * itemsize >= _SPLIT_THRESHOLD_BYTES):
        n_opts = [d for d in _divisors(N) if d < N and d % pack == 0]
        c_opts = [d for d in c_cands if d < C]
        if n_opts:
            tile_n = max(n_opts)
        elif c_opts:
            tile_c = max(c_opts)

    grid = (N // tile_n, C // tile_c, num_k)

    kernel = functools.partial(
        _gap_kernel,
        inv_hw=1.0 / float(HW),
        hw=HW,
        hw_block=hw_block,
        need_mask=need_mask,
    )

    return pl.pallas_call(
        kernel,
        out_shape=jax.ShapeDtypeStruct((N, C), x.dtype),
        grid=grid,
        in_specs=[
            pl.BlockSpec((tile_n, tile_c, hw_block), lambda n, c, k: (n, c, k)),
        ],
        out_specs=pl.BlockSpec((tile_n, tile_c), lambda n, c, k: (n, c)),
        scratch_shapes=[pltpu.VMEM((tile_n, tile_c), jnp.float32)],
        compiler_params=pltpu.CompilerParams(
            dimension_semantics=("parallel", "parallel", "arbitrary"),
            vmem_limit_bytes=_VMEM_LIMIT_BYTES,
        ),
    )(x3)


if __name__ == "__main__":
    key = jax.random.PRNGKey(0)

    def check(x, *, target_block_bytes=_TARGET_BLOCK_BYTES, atol=1e-5, rtol=1e-5):
        out = jax.block_until_ready(
            global_avg_flatten(x, target_block_bytes=target_block_bytes))
        ref = jnp.mean(x.astype(jnp.float32), axis=(2, 3)).astype(x.dtype)
        assert out.shape == (x.shape[0], x.shape[1]), out.shape
        assert jnp.allclose(out.astype(jnp.float32), ref.astype(jnp.float32),
                            atol=atol, rtol=rtol)

    k0, k1, k2, k3 = jax.random.split(key, 4)

    # Canonical small NCHW feature map (the module's forward).
    check(jax.random.normal(k0, (2, 4, 16, 16), dtype=jnp.float32))

    # bf16 inputs (f32 accumulation inside the kernel).
    check(jax.random.normal(k1, (2, 4, 16, 16)).astype(jnp.bfloat16),
          atol=2e-2, rtol=2e-2)

    # Exercise the H*W reduction axis + ragged-tail masking (tiny block budget).
    check(jax.random.normal(k2, (1, 8, 20, 20), dtype=jnp.float32),
          target_block_bytes=8 * 1024)

    # Exercise lane-dense channel tiling (tile_c = 128 < C).
    check(jax.random.normal(k3, (1, 256, 16, 16), dtype=jnp.float32),
          target_block_bytes=128 * 1024)

    print("KERNEL_OK")
</pallas_src>

<mosaic_0001>
module attributes {stable_mosaic.version = 11 : i64} {
  func.func @_gap_kernel(%arg0: i32, %arg1: i32, %arg2: i32, %arg3: memref<2x4x256xf32, #tpu.memory_space<vmem>>, %arg4: memref<2x4xf32, #tpu.memory_space<vmem>>, %arg5: memref<2x4xf32, #tpu.memory_space<vmem>>) attributes {dimension_semantics = [#tpu.dimension_semantics<parallel>, #tpu.dimension_semantics<parallel>, #tpu.dimension_semantics<arbitrary>], iteration_bounds = array<i64: 1, 1, 1>, scalar_prefetch = 0 : i64, scratch_operands = 1 : i64, tpu.core_type = #tpu.core_type<tc>, window_params = [{transform_indices = @transform_0, window_bounds = array<i64: 2, 4, 256>}, {transform_indices = @transform_1, window_bounds = array<i64: 2, 4>}]} {
    %c0_i32 = arith.constant 0 : i32
    %0 = arith.cmpi eq, %arg2, %c0_i32 : i32
    %1 = arith.extui %0 : i1 to i32
    %c0_i32_0 = arith.constant 0 : i32
    %2 = arith.cmpi ne, %1, %c0_i32_0 : i32
    scf.if %2 {
      %cst_9 = arith.constant 0.000000e+00 : f32
      %11 = vector.broadcast %cst_9 : f32 to vector<2x4xf32>
      %c0_10 = arith.constant 0 : index
      %c0_11 = arith.constant 0 : index
      %12 = vector.load %arg5[%c0_10, %c0_11] : memref<2x4xf32, #tpu.memory_space<vmem>>, vector<2x4xf32>
      tpu.vector_store %arg5[%c0_10, %c0_11], %11 {strides = array<i32>} : memref<2x4xf32, #tpu.memory_space<vmem>>, vector<2x4xf32>,
    } else {
    }
    %c0 = arith.constant 0 : index
    %c0_1 = arith.constant 0 : index
    %c0_2 = arith.constant 0 : index
    %3 = vector.load %arg3[%c0, %c0_1, %c0_2] : memref<2x4x256xf32, #tpu.memory_space<vmem>>, vector<2x4x256xf32>
    %c0_3 = arith.constant 0 : index
    %c0_4 = arith.constant 0 : index
    %4 = vector.load %arg5[%c0_3, %c0_4] : memref<2x4xf32, #tpu.memory_space<vmem>>, vector<2x4xf32>
    %cst = arith.constant dense<0.000000e+00> : vector<2x4xf32>
    %5 = vector.multi_reduction <add>, %3, %cst [2] : vector<2x4x256xf32> to vector<2x4xf32>
    %6 = arith.addf %4, %5 : vector<2x4xf32>
    %c0_5 = arith.constant 0 : index
    %c0_6 = arith.constant 0 : index
    %7 = vector.load %arg5[%c0_5, %c0_6] : memref<2x4xf32, #tpu.memory_space<vmem>>, vector<2x4xf32>
    tpu.vector_store %arg5[%c0_5, %c0_6], %6 {strides = array<i32>} : memref<2x4xf32, #tpu.memory_space<vmem>>, vector<2x4xf32>,
    %c0_i32_7 = arith.constant 0 : i32
    %8 = arith.cmpi eq, %arg2, %c0_i32_7 : i32
    %9 = arith.extui %8 : i1 to i32
    %c0_i32_8 = arith.constant 0 : i32
    %10 = arith.cmpi ne, %9, %c0_i32_8 : i32
    scf.if %10 {
      %c0_9 = arith.constant 0 : index
      %c0_10 = arith.constant 0 : index
      %11 = vector.load %arg5[%c0_9, %c0_10] : memref<2x4xf32, #tpu.memory_space<vmem>>, vector<2x4xf32>
      %cst_11 = arith.constant 3.906250e-03 : f32
      %12 = vector.broadcast %cst_11 : f32 to vector<2x4xf32>
      %13 = arith.mulf %11, %12 : vector<2x4xf32>
      %c0_12 = arith.constant 0 : index
      %c0_13 = arith.constant 0 : index
      %14 = vector.load %arg4[%c0_12, %c0_13] : memref<2x4xf32, #tpu.memory_space<vmem>>, vector<2x4xf32>
      tpu.vector_store %arg4[%c0_12, %c0_13], %13 {strides = array<i32>} : memref<2x4xf32, #tpu.memory_space<vmem>>, vector<2x4xf32>,
    } else {
    }
    return
  }
  func.func @transform_0(%arg0: i32, %arg1: i32, %arg2: i32) -> (i32, i32, i32) {
    %c0_i32 = arith.constant 0 : i32
    return %arg0, %arg1, %arg2 : i32, i32, i32
  }
  func.func @transform_1(%arg0: i32, %arg1: i32, %arg2: i32) -> (i32, i32) {
    %c0_i32 = arith.constant 0 : i32
    return %arg0, %arg1 : i32, i32
  }
}

</mosaic_0001>

<llo_original>
// kernel: tpu_custom_call.1
$region0: #{tpu_custom_call.1}
  #allocation0 [shape = 'u32[]', space=smem, size = 0x4, offset = 0x4, fixed_abs, tag = 'smem constant byte address 0x4 - core index']
  #allocation1 [shape = 'u32[144,128]{1,0:T(1,128)}', space=vmem, size = 0x12000, scoped, tag = 'internal scratch']
  #allocation2 [shape = 'f32[2,4]{1,0:T(2,128)}', space=vmem, size = 0x400, scoped, tag = 'scratch operand']
  %s0 = inlined_call_operand.hbm [shape: f32[2,4,256], index: 0, kind: input, shape index: {}]
  %s1 = inlined_call_operand.hbm [shape: f32[2,4], index: 1, kind: output, shape index: {}]
  %s2 = sld [smem:[#allocation0]]
  $region26: #{tpu_custom_call.1} parent=0
    _
  %s4 = ssub.s32 1, %s2
  %s5 = scalar_select 0, %s4, %s2
  $region1: #{tpu_custom_call.1} parent=0
    #allocation3 [shape = 'u8[8192]{0}', space=vmem, size = 0x2000, scoped, tag = 'input window, operand 0, single buffered']
    #allocation4 [shape = 's32[1]{0}', space=sflag, size = 0x4, scoped, tag = 'scoped memory for tpu_custom_call.1']
    #allocation5 [shape = 's32[1]{0}', space=sflag, size = 0x4, scoped, tag = 'scoped memory for tpu_custom_call.1']
    #allocation6 [shape = 'u8[1024]{0}', space=vmem, size = 0x400, scoped, tag = 'output window, operand 0, single buffered']
    %6 = vsyncpa [#allocation4], 0
    %7 = vsyncpa [#allocation5], 0
    // Predicated region
    $region2: #{tpu_custom_call.1} parent=1 // pred_check
      _
    $region3: #{tpu_custom_call.1} parent=1 // pred_check_branch
      %9 = sbr.rel (0) target = $region5
    $region4: #{tpu_custom_call.1} parent=1 // pred_region
      %s11 = ssub.s32 256, 256
      %12 = vsyncadd [#allocation4], %s11
      %s13 = sshll.u32 [#allocation3], 4
      %s14 = int_to_ptr.vmem [resolvable:$true] %s13
      %19 = dma.hbm_to_vmem [thread:$0]  %s0, 256, %s14, [#allocation4], 128, 128, 8
    $region5: #{tpu_custom_call.1} parent=1 // pred_fallthru
      _
    // Predicated region
    $region6: #{tpu_custom_call.1} parent=1 // pred_check
      _
    $region7: #{tpu_custom_call.1} parent=1 // pred_check_branch
      %21 = sbr.rel (0) target = $region9
    $region8: #{tpu_custom_call.1} parent=1 // pred_region
      %22 = dma.done [#allocation4], 256
    $region9: #{tpu_custom_call.1} parent=1 // pred_fallthru
      _
    %p23 = scmp.eq.s32.totalorder 0, 0
    // Predicated region
    $region10: #{tpu_custom_call.1} parent=1 // pred_check
      %p24 = pneg %p23
    $region11: #{tpu_custom_call.1} parent=1 // pred_check_branch
      %26 = sbr.rel (%p24) target = $region13
    $region12: #{tpu_custom_call.1} parent=1 // pred_region
      %vm27 = vcmask 25600
      %28 = vst.msk [vmem:[#allocation2] sm:$0x3] %vm27, 0.0
    $region13: #{tpu_custom_call.1} parent=1 // pred_fallthru
      _
    %v29 = vld [vmem:[#allocation3] sm:$0xff]
    %v30 = vld [vmem:[#allocation3 + $0x8] sm:$0xff]
    %v31 = vld [vmem:[#allocation2] sm:$0x3]
    %v34 = vcombine.high %v29, %v29
    %v35 = vcombine.high %v30, %v30
    %vm38 = vcmask 1043456
    %v39 = vsel %vm38, %v29, 0.0
    %v40 = vsel %vm38, %v34, 0.0
    %v41 = vadd.f32 %v39, %v40
    %42 = vadd.xlane.f32.xlu0 %v41
    %v43 = vpop.xlane.xlu0 %42
    %v44 = vsel %vm38, %v30, 0.0
    %v45 = vsel %vm38, %v35, 0.0
    %v46 = vadd.f32 %v44, %v45
    %47 = vadd.xlane.f32.xlu0 %v46
    %v48 = vpop.xlane.xlu0 %47
    %v51 = vlaneseq
    %v52 = vand.u32 %v51, 127
    %v53 = vlaneseq
    %v54 = vshrl.u32 %v53, 7
    %v55 = vsub.s32 %v52, %v54
    %v56 = vrot.slane %v43, %v55
    %v57 = vlaneseq
    %v58 = vshrl.u32 %v57, 7
    %v59 = vsub.s32 %v52, %v58
    %v60 = vrot.slane %v48, %v59
    %vm61 = vcmask 1041409
    %v62 = vsel %vm61, %v60, %v56
    %v64 = vadd.f32 %v31, %v62
    %vm65 = vcmask 25600
    %66 = vst.msk [vmem:[#allocation2] sm:$0x3] %vm65, %v64
    // Predicated region
    $region14: #{tpu_custom_call.1} parent=1 // pred_check
      %p67 = pneg %p23
    $region15: #{tpu_custom_call.1} parent=1 // pred_check_branch
      %69 = sbr.rel (%p67) target = $region17
    $region16: #{tpu_custom_call.1} parent=1 // pred_region
      %v70 = vld [vmem:[#allocation2] sm:$0x3]
      %v71 = vmul.f32 %v70, 0.00390625
      %72 = vst.msk [vmem:[#allocation6] sm:$0x3] %vm65, %v71
    $region17: #{tpu_custom_call.1} parent=1 // pred_fallthru
      _
    // Predicated region
    $region18: #{tpu_custom_call.1} parent=1 // pred_check
      _
    $region19: #{tpu_custom_call.1} parent=1 // pred_check_branch
      %74 = sbr.rel (0) target = $region21
    $region20: #{tpu_custom_call.1} parent=1 // pred_region
      %s76 = ssub.s32 32, 32
      %77 = vsyncadd [#allocation5], %s76
      %s79 = sshll.u32 [#allocation6], 4
      %s80 = int_to_ptr.vmem [resolvable:$true] %s79
      %82 = dma.vmem_to_hbm [thread:$0]  %s80, 32, %s1, [#allocation5]
    $region21: #{tpu_custom_call.1} parent=1 // pred_fallthru
      _
    // Predicated region
    $region22: #{tpu_custom_call.1} parent=1 // pred_check
      _
    $region23: #{tpu_custom_call.1} parent=1 // pred_check_branch
      %84 = sbr.rel (0) target = $region25
    $region24: #{tpu_custom_call.1} parent=1 // pred_region
      %85 = dma.done [#allocation5], 32
    $region25: #{tpu_custom_call.1} parent=1 // pred_fallthru
      _
    %86 = vsyncpa [#allocation4], 1
    %87 = vsyncpa [#allocation5], 1

</llo_original>
